<compile_context>
chip_gen: v5e
topology: v5e:2x2
jax: 0.10.0
libtpu: 0.0.40
codegen_flags: <defaults>
</compile_context>

<pallas_src>
import math

import numpy as np
import jax
import jax.numpy as jnp
from jax.experimental import pallas as pl
from jax.experimental.pallas import tpu as pltpu

D_IN = 2 * 64          # 128
D_H1_LOGICAL = 3 * 64  # 192 (PyTorch affine1 out)
D_H1 = 256             # padded to an integer number of (., 128) vregs
D_H2 = 2 * 64          # 128
D_OUT_LOGICAL = 64     # board squares
D_OUT = 128            # lane-dense padded output (lanes 64..127 always illegal)

NEG = -1e30            # Python float: safe to use inside the kernel


# ----------------------------------------------------------------------------
# Kernel: fused MLP (relu / tanh) + masked log-softmax + Gumbel-max sampling.
#   x:(tm,128) bf16          bias:(tm,128) f32   (0 for legal lane, -1e30 else)
#   gumbel:(tm,128) f32      w1:(128,256) bf16   b1:(1,256) f32
#   w2:(256,128) bf16        b2:(1,128) f32      w3:(128,128) bf16  b3:(1,128) f32
# Outputs: action:(tm,1) int32 (board square), logp:(tm,1) f32 (log prob of it).
# ----------------------------------------------------------------------------
def policy_kernel(x_ref, bias_ref, gumbel_ref, w1_ref, b1_ref, w2_ref, b2_ref,
                  w3_ref, b3_ref, act_ref, logp_ref):
    h1 = jnp.dot(x_ref[...], w1_ref[...],
                 preferred_element_type=jnp.float32) + b1_ref[...]
    h1 = jnp.maximum(h1, 0.0)                                       # F.relu
    h2 = jnp.dot(h1.astype(jnp.bfloat16), w2_ref[...],
                 preferred_element_type=jnp.float32) + b2_ref[...]
    h2 = jnp.tanh(h2)                                               # F.tanh
    logits = jnp.dot(h2.astype(jnp.bfloat16), w3_ref[...],
                     preferred_element_type=jnp.float32) + b3_ref[...]

    # Additive masking (illegal / padded lanes carry ~-1e30) -> log-softmax.
    masked = logits + bias_ref[...]
    m = jnp.max(masked, axis=-1, keepdims=True)
    lse = m + jnp.log(jnp.sum(jnp.exp(masked - m), axis=-1, keepdims=True))
    logp = masked - lse

    # Gumbel-max sampling == Categorical(softmax(x[enables])) of the original.
    scores = masked + gumbel_ref[...]
    s_max = jnp.max(scores, axis=-1, keepdims=True)
    lane = jax.lax.broadcasted_iota(jnp.int32, scores.shape, 1)
    action = jnp.min(jnp.where(scores >= s_max, lane, D_OUT),
                     axis=-1, keepdims=True)                        # (tm,1) i32
    act_ref[...] = action
    logp_ref[...] = jnp.sum(jnp.where(lane == action, logp, 0.0),
                            axis=-1, keepdims=True)


# ----------------------------------------------------------------------------
# Tile selection: biggest tile that divides B (step overhead dominates); keep
# the grid a multiple of 2 on 2-TensorCore chips (v7x) so "parallel" shards it.
# ----------------------------------------------------------------------------
_TM_CANDIDATES = (1024, 512, 256, 128, 64, 32, 16, 8)


def _num_tensorcores_per_chip():
    try:
        kind = jax.devices()[0].device_kind.lower()
    except Exception:  # e.g. interpret/emulated backends
        return 1
    return 2 if ("v7" in kind or "7x" in kind) else 1


def _pick_tile(batch):
    ncores = _num_tensorcores_per_chip()
    for cand in _TM_CANDIDATES:
        if batch % cand == 0:
            tm = cand
            if ncores == 2 and batch // tm < 2 and tm >= 16:
                tm //= 2          # give the second TensorCore a tile
            return tm
    raise ValueError("batch must be a multiple of 8")


def policy_sample(x_bf16, mask_bias, gumbel, w1, b1, w2, b2, w3, b3):
    """x:(B,128) bf16, mask_bias:(B,128) f32, gumbel:(B,128) f32
       -> actions:(B,) int32 board squares, logps:(B,) f32 log-probs."""
    B = x_bf16.shape[0]
    tm = _pick_tile(B)
    grid = (B // tm,)

    flops = 2 * B * (D_IN * D_H1 + D_H1 * D_H2 + D_H2 * D_OUT)
    transcendentals = B * (D_H2 + 2 * D_OUT)                 # tanh + exp + log
    bytes_accessed = (B * (2 * D_IN + 4 * D_OUT + 4 * D_OUT + 8)
                      + 2 * (D_IN * D_H1 + D_H1 * D_H2 + D_H2 * D_OUT)
                      + 4 * (D_H1 + D_H2 + D_OUT))

    grid_spec = pltpu.PrefetchScalarGridSpec(
        num_scalar_prefetch=0,
        grid=grid,
        in_specs=[
            pl.BlockSpec((tm, D_IN), lambda i: (i, 0)),
            pl.BlockSpec((tm, D_OUT), lambda i: (i, 0)),
            pl.BlockSpec((tm, D_OUT), lambda i: (i, 0)),
            # weights/biases: constant block index -> fetched once, resident
            pl.BlockSpec((D_IN, D_H1), lambda i: (0, 0)),
            pl.BlockSpec((1, D_H1), lambda i: (0, 0)),
            pl.BlockSpec((D_H1, D_H2), lambda i: (0, 0)),
            pl.BlockSpec((1, D_H2), lambda i: (0, 0)),
            pl.BlockSpec((D_H2, D_OUT), lambda i: (0, 0)),
            pl.BlockSpec((1, D_OUT), lambda i: (0, 0)),
        ],
        out_specs=[
            pl.BlockSpec((tm, 1), lambda i: (i, 0)),
            pl.BlockSpec((tm, 1), lambda i: (i, 0)),
        ],
    )
    actions, logps = pl.pallas_call(
        policy_kernel,
        out_shape=(jax.ShapeDtypeStruct((B, 1), jnp.int32),
                   jax.ShapeDtypeStruct((B, 1), jnp.float32)),
        grid_spec=grid_spec,
        compiler_params=pltpu.CompilerParams(
            dimension_semantics=("parallel",),
            vmem_limit_bytes=32 * 1024 * 1024),
        cost_estimate=pl.CostEstimate(flops=flops,
                                      transcendentals=transcendentals,
                                      bytes_accessed=bytes_accessed),
    )(x_bf16, mask_bias, gumbel, w1, b1, w2, b2, w3, b3)
    return actions[:, 0], logps[:, 0]


# ----------------------------------------------------------------------------
# Params (PyTorch nn.Linear default init on the logical fan-in, zero-padded to
# the lane-dense shapes, weights stored transposed (in,out) and cast to bf16).
# ----------------------------------------------------------------------------
def init_params(key):
    def linear(key, fan_in, fan_out, pad_in, pad_out):
        kw, kb = jax.random.split(key)
        bound = 1.0 / math.sqrt(fan_in)
        w = jax.random.uniform(kw, (fan_in, fan_out), jnp.float32, -bound, bound)
        b = jax.random.uniform(kb, (fan_out,), jnp.float32, -bound, bound)
        w = jnp.pad(w, ((0, pad_in - fan_in), (0, pad_out - fan_out)))
        b = jnp.pad(b, (0, pad_out - fan_out)).reshape(1, pad_out)
        return w.astype(jnp.bfloat16), b

    k1, k2, k3 = jax.random.split(key, 3)
    w1, b1 = linear(k1, D_IN, D_H1_LOGICAL, D_IN, D_H1)
    w2, b2 = linear(k2, D_H1_LOGICAL, D_H2, D_H1, D_H2)
    w3, b3 = linear(k3, D_H2, D_OUT_LOGICAL, D_H2, D_OUT)
    return (w1, b1, w2, b2, w3, b3)


# ----------------------------------------------------------------------------
# Jitted pure paths (single observation and batched).
# ----------------------------------------------------------------------------
@jax.jit
def _forward_single(params, obs, mask128, player_idx, key):
    rows = jnp.where(player_idx == 0,
                     jnp.array([0, 2], jnp.int32),
                     jnp.array([1, 2], jnp.int32))
    flat = obs[rows, :].reshape(D_IN)
    x = jnp.zeros((8, D_IN), jnp.bfloat16).at[0].set(flat.astype(jnp.bfloat16))
    bias = jnp.full((8, D_OUT), NEG, jnp.float32).at[0].set(
        (mask128 - 1.0) * 1e30)
    gumbel = jax.random.gumbel(key, (8, D_OUT), jnp.float32)
    actions, logps = policy_sample(x, bias, gumbel, *params)
    # sampled lane IS the board move (== enables[action] in the PyTorch module)
    return actions[0], logps[0]


@jax.jit
def policy_net_forward_batch(params, obs_b, players, mask64_b, key):
    """obs_b:(B,3,64), players:(B,), mask64_b:(B,64) -> (moves:(B,), logp:(B,)).
    NOTE: rows with an all-zero mask (no legal move / sentinel 65) must be
    filtered by the caller, as in the single-observation path."""
    own = jnp.where((players == 0)[:, None], obs_b[:, 0, :], obs_b[:, 1, :])
    x = jnp.concatenate([own, obs_b[:, 2, :]], axis=-1).astype(jnp.bfloat16)
    mask128 = jnp.concatenate([mask64_b, jnp.zeros_like(mask64_b)], axis=-1)
    mask_bias = (mask128 - 1.0) * 1e30            # 0 legal, -1e30 illegal/pad
    gumbel = jax.random.gumbel(key, mask128.shape, jnp.float32)
    return policy_sample(x, mask_bias, gumbel, *params)


def policy_net_forward(params, observation, enables, player, train, rng_key):
    """Mirrors PolicyNet.forward for one observation.  Returns (move, log_prob);
    move is the board index (== enables[action]), or (65, None) sentinel."""
    del train  # only controlled Variable(volatile=...) in PyTorch
    enables_np = np.asarray(enables, dtype=np.int32)
    if int(enables_np[0]) == 65:                 # host-side sentinel, no sync
        return 65, None
    mask128 = np.zeros((D_OUT,), np.float32)
    mask128[enables_np] = 1.0
    obs = jnp.asarray(observation, dtype=jnp.float32)
    move, log_prob = _forward_single(params, obs, jnp.asarray(mask128),
                                     jnp.int32(player), rng_key)
    # TODO(synk): saved_log_probs list / self.step counter / optimizer are
    # host-side Python training state; caller appends `log_prob` as needed.
    return move, log_prob


# Pure-JAX reference (identical bf16-matmul / f32-accumulate math).
def _reference_logp(params, x_f32, mask128):
    w1, b1, w2, b2, w3, b3 = params
    h1 = jnp.maximum(jnp.dot(x_f32.astype(jnp.bfloat16), w1,
                             preferred_element_type=jnp.float32) + b1, 0.0)
    h2 = jnp.tanh(jnp.dot(h1.astype(jnp.bfloat16), w2,
                          preferred_element_type=jnp.float32) + b2)
    logits = jnp.dot(h2.astype(jnp.bfloat16), w3,
                     preferred_element_type=jnp.float32) + b3
    masked = logits + (mask128 - 1.0) * 1e30
    m = jnp.max(masked, axis=-1, keepdims=True)
    return masked - m - jnp.log(jnp.sum(jnp.exp(masked - m), axis=-1,
                                        keepdims=True))


if __name__ == "__main__":
    key = jax.random.PRNGKey(0)
    (k_param, k_obs, k_sample, k_bobs,
     k_bpl, k_ben, k_bsample) = jax.random.split(key, 7)

    params = init_params(k_param)

    # --- single-observation path (exact PolicyNet.forward semantics) ---
    observation = jax.random.bernoulli(k_obs, 0.3, (3, 64)).astype(jnp.float32)
    enables = [19, 26, 37, 44]
    move, log_prob = policy_net_forward(params, observation, enables,
                                        player=0, train=False, rng_key=k_sample)
    log_prob = jax.block_until_ready(log_prob)
    assert int(move) in enables
    assert float(log_prob) <= 1e-3

    mask128_single = np.zeros((D_OUT,), np.float32)
    mask128_single[np.asarray(enables)] = 1.0
    x_single = jnp.concatenate([observation[0], observation[2]])[None, :]
    ref_single = _reference_logp(params, x_single,
                                 jnp.asarray(mask128_single)[None, :])[0]
    np.testing.assert_allclose(float(log_prob), float(ref_single[int(move)]),
                               rtol=2e-2, atol=2e-2)

    # sentinel branch (enables[0] == 65 -> returns 65)
    s_move, s_lp = policy_net_forward(params, observation, [65],
                                      player=0, train=False, rng_key=k_sample)
    assert s_move == 65 and s_lp is None

    # --- batched path: one (or two, on v7x) big tiles, weights loaded once ---
    B = 256
    obs_b = jax.random.bernoulli(k_bobs, 0.3, (B, 3, 64)).astype(jnp.float32)
    players = jax.random.bernoulli(k_bpl, 0.5, (B,)).astype(jnp.int32)
    mask64 = jax.random.bernoulli(k_ben, 0.15, (B, 64)).astype(jnp.float32)
    mask64 = mask64.at[:, 0].set(1.0)            # guarantee >=1 legal move
    actions, logps = policy_net_forward_batch(params, obs_b, players, mask64,
                                              k_bsample)
    actions, logps = jax.block_until_ready((actions, logps))
    assert actions.shape == (B,) and logps.shape == (B,)
    assert bool(jnp.all(actions < D_OUT_LOGICAL))
    assert bool(jnp.all(mask64[jnp.arange(B), actions] > 0))
    assert bool(jnp.all(logps <= 1e-3))

    # --- numerical check of the fused kernel vs. a pure-JAX reference ---
    own = jnp.where((players == 0)[:, None], obs_b[:, 0, :], obs_b[:, 1, :])
    x_b = jnp.concatenate([own, obs_b[:, 2, :]], axis=-1)
    mask_b = jnp.concatenate([mask64, jnp.zeros_like(mask64)], axis=-1)
    ref_logp = np.asarray(_reference_logp(params, x_b, mask_b))
    got_logp = np.asarray(logps)
    ref_at_action = ref_logp[np.arange(B), np.asarray(actions)]
    np.testing.assert_allclose(got_logp, ref_at_action, rtol=2e-2, atol=2e-2)

    print("KERNEL_OK")
</pallas_src>

<mosaic_0001>
module attributes {stable_mosaic.version = 11 : i64} {
  func.func @policy_kernel(%arg0: i32, %arg1: memref<8x128xbf16, #tpu.memory_space<vmem>>, %arg2: memref<8x128xf32, #tpu.memory_space<vmem>>, %arg3: memref<8x128xf32, #tpu.memory_space<vmem>>, %arg4: memref<128x256xbf16, #tpu.memory_space<vmem>>, %arg5: memref<1x256xf32, #tpu.memory_space<vmem>>, %arg6: memref<256x128xbf16, #tpu.memory_space<vmem>>, %arg7: memref<1x128xf32, #tpu.memory_space<vmem>>, %arg8: memref<128x128xbf16, #tpu.memory_space<vmem>>, %arg9: memref<1x128xf32, #tpu.memory_space<vmem>>, %arg10: memref<8x1xi32, #tpu.memory_space<vmem>>, %arg11: memref<8x1xf32, #tpu.memory_space<vmem>>) attributes {dimension_semantics = [#tpu.dimension_semantics<parallel>], iteration_bounds = array<i64: 1>, scalar_prefetch = 0 : i64, scratch_operands = 0 : i64, tpu.core_type = #tpu.core_type<tc>, window_params = [{transform_indices = @transform_0, window_bounds = array<i64: 8, 128>}, {transform_indices = @transform_1, window_bounds = array<i64: 8, 128>}, {transform_indices = @transform_2, window_bounds = array<i64: 8, 128>}, {pipeline_mode = #tpu.pipeline_mode<synchronous>, transform_indices = @transform_3, window_bounds = array<i64: 128, 256>}, {pipeline_mode = #tpu.pipeline_mode<synchronous>, transform_indices = @transform_4, window_bounds = array<i64: 1, 256>}, {pipeline_mode = #tpu.pipeline_mode<synchronous>, transform_indices = @transform_5, window_bounds = array<i64: 256, 128>}, {pipeline_mode = #tpu.pipeline_mode<synchronous>, transform_indices = @transform_6, window_bounds = array<i64: 1, 128>}, {pipeline_mode = #tpu.pipeline_mode<synchronous>, transform_indices = @transform_7, window_bounds = array<i64: 128, 128>}, {pipeline_mode = #tpu.pipeline_mode<synchronous>, transform_indices = @transform_8, window_bounds = array<i64: 1, 128>}, {transform_indices = @transform_9, window_bounds = array<i64: 8, 1>}, {transform_indices = @transform_10, window_bounds = array<i64: 8, 1>}]} {
    %c0 = arith.constant 0 : index
    %c0_0 = arith.constant 0 : index
    %0 = vector.load %arg1[%c0, %c0_0] : memref<8x128xbf16, #tpu.memory_space<vmem>>, vector<8x128xbf16>
    %c0_1 = arith.constant 0 : index
    %c0_2 = arith.constant 0 : index
    %1 = vector.load %arg4[%c0_1, %c0_2] : memref<128x256xbf16, #tpu.memory_space<vmem>>, vector<128x256xbf16>
    %cst = arith.constant dense<0.000000e+00> : vector<8x256xf32>
    %2 = tpu.matmul %0, %1, %cst {dimension_numbers = #tpu.dot_dimension_numbers<[1], [0], [0], [1], [0, 0, 1, 1], [], []>} : vector<8x128xbf16>, vector<128x256xbf16>, vector<8x256xf32> -> vector<8x256xf32>
    %c0_3 = arith.constant 0 : index
    %c0_4 = arith.constant 0 : index
    %3 = vector.load %arg5[%c0_3, %c0_4] : memref<1x256xf32, #tpu.memory_space<vmem>>, vector<1x256xf32>
    %4 = vector.broadcast %3 : vector<1x256xf32> to vector<8x256xf32>
    %5 = arith.addf %2, %4 : vector<8x256xf32>
    %cst_5 = arith.constant 0.000000e+00 : f32
    %6 = vector.broadcast %cst_5 : f32 to vector<8x256xf32>
    %7 = arith.maximumf %5, %6 : vector<8x256xf32>
    %8 = arith.truncf %7 : vector<8x256xf32> to vector<8x256xbf16>
    %c0_6 = arith.constant 0 : index
    %c0_7 = arith.constant 0 : index
    %9 = vector.load %arg6[%c0_6, %c0_7] : memref<256x128xbf16, #tpu.memory_space<vmem>>, vector<256x128xbf16>
    %cst_8 = arith.constant dense<0.000000e+00> : vector<8x128xf32>
    %10 = tpu.matmul %8, %9, %cst_8 {dimension_numbers = #tpu.dot_dimension_numbers<[1], [0], [0], [1], [0, 0, 1, 1], [], []>} : vector<8x256xbf16>, vector<256x128xbf16>, vector<8x128xf32> -> vector<8x128xf32>
    %c0_9 = arith.constant 0 : index
    %c0_10 = arith.constant 0 : index
    %11 = vector.load %arg7[%c0_9, %c0_10] : memref<1x128xf32, #tpu.memory_space<vmem>>, vector<1x128xf32>
    %12 = vector.broadcast %11 : vector<1x128xf32> to vector<8x128xf32>
    %13 = arith.addf %10, %12 : vector<8x128xf32>
    %14 = math.tanh %13 : vector<8x128xf32>
    %15 = arith.truncf %14 : vector<8x128xf32> to vector<8x128xbf16>
    %c0_11 = arith.constant 0 : index
    %c0_12 = arith.constant 0 : index
    %16 = vector.load %arg8[%c0_11, %c0_12] : memref<128x128xbf16, #tpu.memory_space<vmem>>, vector<128x128xbf16>
    %cst_13 = arith.constant dense<0.000000e+00> : vector<8x128xf32>
    %17 = tpu.matmul %15, %16, %cst_13 {dimension_numbers = #tpu.dot_dimension_numbers<[1], [0], [0], [1], [0, 0, 1, 1], [], []>} : vector<8x128xbf16>, vector<128x128xbf16>, vector<8x128xf32> -> vector<8x128xf32>
    %c0_14 = arith.constant 0 : index
    %c0_15 = arith.constant 0 : index
    %18 = vector.load %arg9[%c0_14, %c0_15] : memref<1x128xf32, #tpu.memory_space<vmem>>, vector<1x128xf32>
    %19 = vector.broadcast %18 : vector<1x128xf32> to vector<8x128xf32>
    %20 = arith.addf %17, %19 : vector<8x128xf32>
    %c0_16 = arith.constant 0 : index
    %c0_17 = arith.constant 0 : index
    %21 = vector.load %arg2[%c0_16, %c0_17] : memref<8x128xf32, #tpu.memory_space<vmem>>, vector<8x128xf32>
    %22 = arith.addf %20, %21 : vector<8x128xf32>
    %cst_18 = arith.constant dense<0xFF800000> : vector<8xf32>
    %23 = vector.multi_reduction <maximumf>, %22, %cst_18 [1] : vector<8x128xf32> to vector<8xf32>
    %24 = vector.shape_cast %23 : vector<8xf32> to vector<8x1xf32>
    %25 = vector.broadcast %24 : vector<8x1xf32> to vector<8x128xf32>
    %26 = arith.subf %22, %25 : vector<8x128xf32>
    %27 = math.exp %26 : vector<8x128xf32>
    %cst_19 = arith.constant dense<0.000000e+00> : vector<8xf32>
    %28 = vector.multi_reduction <add>, %27, %cst_19 [1] : vector<8x128xf32> to vector<8xf32>
    %29 = vector.shape_cast %28 : vector<8xf32> to vector<8x1xf32>
    %30 = math.log %29 : vector<8x1xf32>
    %31 = arith.addf %24, %30 : vector<8x1xf32>
    %32 = vector.broadcast %31 : vector<8x1xf32> to vector<8x128xf32>
    %33 = arith.subf %22, %32 : vector<8x128xf32>
    %c0_20 = arith.constant 0 : index
    %c0_21 = arith.constant 0 : index
    %34 = vector.load %arg3[%c0_20, %c0_21] : memref<8x128xf32, #tpu.memory_space<vmem>>, vector<8x128xf32>
    %35 = arith.addf %22, %34 : vector<8x128xf32>
    %cst_22 = arith.constant dense<0xFF800000> : vector<8xf32>
    %36 = vector.multi_reduction <maximumf>, %35, %cst_22 [1] : vector<8x128xf32> to vector<8xf32>
    %37 = vector.shape_cast %36 : vector<8xf32> to vector<8x1xf32>
    %38 = tpu.iota {dimensions = array<i32: 1>} : vector<8x128xi32>
    %39 = vector.broadcast %37 : vector<8x1xf32> to vector<8x128xf32>
    %40 = arith.cmpf oge, %35, %39 : vector<8x128xf32>
    %c128_i32 = arith.constant 128 : i32
    %41 = vector.broadcast %c128_i32 : i32 to vector<8x128xi32>
    %42 = arith.select %40, %38, %41 : vector<8x128xi1>, vector<8x128xi32>
    %cst_23 = arith.constant dense<2147483647> : vector<8xi32>
    %43 = vector.multi_reduction <minsi>, %42, %cst_23 [1] : vector<8x128xi32> to vector<8xi32>
    %44 = vector.shape_cast %43 : vector<8xi32> to vector<8x1xi32>
    %c0_24 = arith.constant 0 : index
    %c0_25 = arith.constant 0 : index
    %45 = vector.load %arg10[%c0_24, %c0_25] : memref<8x1xi32, #tpu.memory_space<vmem>>, vector<8x1xi32>
    tpu.vector_store %arg10[%c0_24, %c0_25], %44 {strides = array<i32>} : memref<8x1xi32, #tpu.memory_space<vmem>>, vector<8x1xi32>,
    %46 = vector.broadcast %44 : vector<8x1xi32> to vector<8x128xi32>
    %47 = arith.cmpi eq, %38, %46 : vector<8x128xi32>
    %cst_26 = arith.constant 0.000000e+00 : f32
    %48 = vector.broadcast %cst_26 : f32 to vector<8x128xf32>
    %49 = arith.select %47, %33, %48 : vector<8x128xi1>, vector<8x128xf32>
    %cst_27 = arith.constant dense<0.000000e+00> : vector<8xf32>
    %50 = vector.multi_reduction <add>, %49, %cst_27 [1] : vector<8x128xf32> to vector<8xf32>
    %51 = vector.shape_cast %50 : vector<8xf32> to vector<8x1xf32>
    %c0_28 = arith.constant 0 : index
    %c0_29 = arith.constant 0 : index
    %52 = vector.load %arg11[%c0_28, %c0_29] : memref<8x1xf32, #tpu.memory_space<vmem>>, vector<8x1xf32>
    tpu.vector_store %arg11[%c0_28, %c0_29], %51 {strides = array<i32>} : memref<8x1xf32, #tpu.memory_space<vmem>>, vector<8x1xf32>,
    return
  }
  func.func @transform_0(%arg0: i32) -> (i32, i32) {
    %c0_i32 = arith.constant 0 : i32
    %c0_i32_0 = arith.constant 0 : i32
    return %arg0, %c0_i32 : i32, i32
  }
  func.func @transform_1(%arg0: i32) -> (i32, i32) {
    %c0_i32 = arith.constant 0 : i32
    %c0_i32_0 = arith.constant 0 : i32
    return %arg0, %c0_i32 : i32, i32
  }
  func.func @transform_2(%arg0: i32) -> (i32, i32) {
    %c0_i32 = arith.constant 0 : i32
    %c0_i32_0 = arith.constant 0 : i32
    return %arg0, %c0_i32 : i32, i32
  }
  func.func @transform_3(%arg0: i32) -> (i32, i32) {
    %c0_i32 = arith.constant 0 : i32
    %c0_i32_0 = arith.constant 0 : i32
    %c0_i32_1 = arith.constant 0 : i32
    return %c0_i32, %c0_i32_0 : i32, i32
  }
  func.func @transform_4(%arg0: i32) -> (i32, i32) {
    %c0_i32 = arith.constant 0 : i32
    %c0_i32_0 = arith.constant 0 : i32
    %c0_i32_1 = arith.constant 0 : i32
    return %c0_i32, %c0_i32_0 : i32, i32
  }
  func.func @transform_5(%arg0: i32) -> (i32, i32) {
    %c0_i32 = arith.constant 0 : i32
    %c0_i32_0 = arith.constant 0 : i32
    %c0_i32_1 = arith.constant 0 : i32
    return %c0_i32, %c0_i32_0 : i32, i32
  }
  func.func @transform_6(%arg0: i32) -> (i32, i32) {
    %c0_i32 = arith.constant 0 : i32
    %c0_i32_0 = arith.constant 0 : i32
    %c0_i32_1 = arith.constant 0 : i32
    return %c0_i32, %c0_i32_0 : i32, i32
  }
  func.func @transform_7(%arg0: i32) -> (i32, i32) {
    %c0_i32 = arith.constant 0 : i32
    %c0_i32_0 = arith.constant 0 : i32
    %c0_i32_1 = arith.constant 0 : i32
    return %c0_i32, %c0_i32_0 : i32, i32
  }
  func.func @transform_8(%arg0: i32) -> (i32, i32) {
    %c0_i32 = arith.constant 0 : i32
    %c0_i32_0 = arith.constant 0 : i32
    %c0_i32_1 = arith.constant 0 : i32
    return %c0_i32, %c0_i32_0 : i32, i32
  }
  func.func @transform_9(%arg0: i32) -> (i32, i32) {
    %c0_i32 = arith.constant 0 : i32
    %c0_i32_0 = arith.constant 0 : i32
    return %arg0, %c0_i32 : i32, i32
  }
  func.func @transform_10(%arg0: i32) -> (i32, i32) {
    %c0_i32 = arith.constant 0 : i32
    %c0_i32_0 = arith.constant 0 : i32
    return %arg0, %c0_i32 : i32, i32
  }
}

</mosaic_0001>

<llo_original>
// kernel: _forward_single.1
$region0: #{_forward_single.1}
  #allocation0 [shape = 'u32[]', space=smem, size = 0x4, offset = 0x4, fixed_abs, tag = 'smem constant byte address 0x4 - core index']
  #allocation1 [shape = 'u32[72,128]{1,0:T(1,128)}', space=vmem, size = 0x9000, scoped, tag = 'internal scratch']
  %s0 = inlined_call_operand.vmem [shape: bf16[8,128], index: 0, kind: input, shape index: {}]
  %s1 = inlined_call_operand.vmem [shape: f32[8,128], index: 1, kind: input, shape index: {}]
  %s2 = inlined_call_operand.vmem [shape: f32[8,128], index: 2, kind: input, shape index: {}]
  %s3 = inlined_call_operand.hbm [shape: bf16[128,256], index: 3, kind: input, shape index: {}]
  %s4 = inlined_call_operand.vmem [shape: f32[1,256], index: 4, kind: input, shape index: {}]
  %s5 = inlined_call_operand.hbm [shape: bf16[256,128], index: 5, kind: input, shape index: {}]
  %s6 = inlined_call_operand.vmem [shape: f32[1,128], index: 6, kind: input, shape index: {}]
  %s7 = inlined_call_operand.vmem [shape: bf16[128,128], index: 7, kind: input, shape index: {}]
  %s8 = inlined_call_operand.vmem [shape: f32[1,128], index: 8, kind: input, shape index: {}]
  %s9 = inlined_call_operand.vmem [shape: s32[8,1], index: 9, kind: output, shape index: {0}]
  %s10 = inlined_call_operand.vmem [shape: f32[8,1], index: 10, kind: output, shape index: {1}]
  %11 = xla_tuple %s9, %s10
  %s12 = sld [smem:[#allocation0]]
  $region62: #{_forward_single.1} parent=0
    _
  %s14 = ssub.s32 1, %s12
  %s15 = scalar_select 0, %s14, %s12
  $region1: #{_forward_single.1} parent=0
    #allocation2 [shape = 'u8[65536]{0}', space=vmem, size = 0x10000, scoped, tag = 'input window, operand 3, single buffered']
    #allocation3 [shape = 's32[1]{0}', space=sflag, size = 0x4, scoped, tag = 'scoped memory for _forward_single.1']
    #allocation4 [shape = 'u8[65536]{0}', space=vmem, size = 0x10000, scoped, tag = 'input window, operand 5, single buffered']
    #allocation5 [shape = 's32[1]{0}', space=sflag, size = 0x4, scoped, tag = 'scoped memory for _forward_single.1']
    %16 = vsyncpa [#allocation3], 0
    %17 = vsyncpa [#allocation5], 0
    // Predicated region
    $region2: #{_forward_single.1} parent=1 // pred_check
      _
    $region3: #{_forward_single.1} parent=1 // pred_check_branch
      %19 = sbr.rel (0) target = $region5
    $region4: #{_forward_single.1} parent=1 // pred_region
      _
    $region5: #{_forward_single.1} parent=1 // pred_fallthru
      _
    // Predicated region
    $region6: #{_forward_single.1} parent=1 // pred_check
      _
    $region7: #{_forward_single.1} parent=1 // pred_check_branch
      %21 = sbr.rel (0) target = $region9
    $region8: #{_forward_single.1} parent=1 // pred_region
      _
    $region9: #{_forward_single.1} parent=1 // pred_fallthru
      _
    // Predicated region
    $region10: #{_forward_single.1} parent=1 // pred_check
      _
    $region11: #{_forward_single.1} parent=1 // pred_check_branch
      %23 = sbr.rel (0) target = $region13
    $region12: #{_forward_single.1} parent=1 // pred_region
      _
    $region13: #{_forward_single.1} parent=1 // pred_fallthru
      _
    // Predicated region
    $region14: #{_forward_single.1} parent=1 // pred_check
      _
    $region15: #{_forward_single.1} parent=1 // pred_check_branch
      %25 = sbr.rel (0) target = $region17
    $region16: #{_forward_single.1} parent=1 // pred_region
      %27 = vsyncadd [#allocation3], 0
      %s28 = sshll.u32 %s3, 4
      %s29 = int_to_ptr.hbm [resolvable:$true] %s28
      %s30 = sshll.u32 [#allocation2], 4
      %s31 = int_to_ptr.vmem [resolvable:$true] %s30
      %36 = dma.hbm_to_vmem [thread:$0]  %s29, 2048, %s31, [#allocation3], 128, 128, 8
    $region17: #{_forward_single.1} parent=1 // pred_fallthru
      _
    // Predicated region
    $region18: #{_forward_single.1} parent=1 // pred_check
      _
    $region19: #{_forward_single.1} parent=1 // pred_check_branch
      %38 = sbr.rel (0) target = $region21
    $region20: #{_forward_single.1} parent=1 // pred_region
      _
    $region21: #{_forward_single.1} parent=1 // pred_fallthru
      _
    // Predicated region
    $region22: #{_forward_single.1} parent=1 // pred_check
      _
    $region23: #{_forward_single.1} parent=1 // pred_check_branch
      %40 = sbr.rel (0) target = $region25
    $region24: #{_forward_single.1} parent=1 // pred_region
      %42 = vsyncadd [#allocation5], 0
      %s43 = sshll.u32 %s5, 4
      %s44 = int_to_ptr.hbm [resolvable:$true] %s43
      %s45 = sshll.u32 [#allocation4], 4
      %s46 = int_to_ptr.vmem [resolvable:$true] %s45
      %51 = dma.hbm_to_vmem [thread:$0]  %s44, 2048, %s46, [#allocation5], 64, 64, 4
    $region25: #{_forward_single.1} parent=1 // pred_fallthru
      _
    // Predicated region
    $region26: #{_forward_single.1} parent=1 // pred_check
      _
    $region27: #{_forward_single.1} parent=1 // pred_check_branch
      %53 = sbr.rel (0) target = $region29
    $region28: #{_forward_single.1} parent=1 // pred_region
      _
    $region29: #{_forward_single.1} parent=1 // pred_fallthru
      _
    // Predicated region
    $region30: #{_forward_single.1} parent=1 // pred_check
      _
    $region31: #{_forward_single.1} parent=1 // pred_check_branch
      %55 = sbr.rel (0) target = $region33
    $region32: #{_forward_single.1} parent=1 // pred_region
      _
    $region33: #{_forward_single.1} parent=1 // pred_fallthru
      _
    // Predicated region
    $region34: #{_forward_single.1} parent=1 // pred_check
      _
    $region35: #{_forward_single.1} parent=1 // pred_check_branch
      %57 = sbr.rel (0) target = $region37
    $region36: #{_forward_single.1} parent=1 // pred_region
      _
    $region37: #{_forward_single.1} parent=1 // pred_fallthru
      _
    // Predicated region
    $region38: #{_forward_single.1} parent=1 // pred_check
      _
    $region39: #{_forward_single.1} parent=1 // pred_check_branch
      %59 = sbr.rel (0) target = $region41
    $region40: #{_forward_single.1} parent=1 // pred_region
      %61 = dma.done [#allocation3], 2048
    $region41: #{_forward_single.1} parent=1 // pred_fallthru
      _
    // Predicated region
    $region42: #{_forward_single.1} parent=1 // pred_check
      _
    $region43: #{_forward_single.1} parent=1 // pred_check_branch
      %63 = sbr.rel (0) target = $region45
    $region44: #{_forward_single.1} parent=1 // pred_region
      %65 = dma.done [#allocation5], 2048
    $region45: #{_forward_single.1} parent=1 // pred_fallthru
      _
    %v66 = vld [vmem:[%s0] sm:$0xf]
    %v67 = vld [vmem:[#allocation2] sm:$0xff]
    %v68 = vld [vmem:[#allocation2 + $0x8] sm:$0xff]
    %v69 = vld [vmem:[#allocation2 + $0x10] sm:$0xff]
    %v70 = vld [vmem:[#allocation2 + $0x18] sm:$0xff]
    %v71 = vld [vmem:[#allocation2 + $0x20] sm:$0xff]
    %v72 = vld [vmem:[#allocation2 + $0x28] sm:$0xff]
    %v73 = vld [vmem:[#allocation2 + $0x30] sm:$0xff]
    %v74 = vld [vmem:[#allocation2 + $0x38] sm:$0xff]
    %v75 = vld [vmem:[#allocation2 + $0x40] sm:$0xff]
    %v76 = vld [vmem:[#allocation2 + $0x48] sm:$0xff]
    %v77 = vld [vmem:[#allocation2 + $0x50] sm:$0xff]
    %v78 = vld [vmem:[#allocation2 + $0x58] sm:$0xff]
    %v79 = vld [vmem:[#allocation2 + $0x60] sm:$0xff]
    %v80 = vld [vmem:[#allocation2 + $0x68] sm:$0xff]
    %v81 = vld [vmem:[#allocation2 + $0x70] sm:$0xff]
    %v82 = vld [vmem:[#allocation2 + $0x78] sm:$0xff]
    %v83 = vld [vmem:[%s4] sm:$0x3]
    %v85 = vperm.slane %v83, 0
    %v86 = vperm.slane %v83, 1
    %v105 = vunpack.c.l.b16 %v67
    %v106 = vunpack.c.h.b16 %v67
    %v107 = vunpack.c.l.b16 %v68
    %v108 = vunpack.c.h.b16 %v68
    %v109 = vunpack.c.l.b16 %v69
    %v110 = vunpack.c.h.b16 %v69
    %v111 = vunpack.c.l.b16 %v70
    %v112 = vunpack.c.h.b16 %v70
    %v113 = vunpack.c.l.b16 %v71
    %v114 = vunpack.c.h.b16 %v71
    %v115 = vunpack.c.l.b16 %v72
    %v116 = vunpack.c.h.b16 %v72
    %v117 = vunpack.c.l.b16 %v73
    %v118 = vunpack.c.h.b16 %v73
    %v119 = vunpack.c.l.b16 %v74
    %v120 = vunpack.c.h.b16 %v74
    %v121 = vunpack.c.l.b16 %v75
    %v122 = vunpack.c.h.b16 %v75
    %v123 = vunpack.c.l.b16 %v76
    %v124 = vunpack.c.h.b16 %v76
    %v125 = vunpack.c.l.b16 %v77
    %v126 = vunpack.c.h.b16 %v77
    %v127 = vunpack.c.l.b16 %v78
    %v128 = vunpack.c.h.b16 %v78
    %v129 = vunpack.c.l.b16 %v79
    %v130 = vunpack.c.h.b16 %v79
    %v131 = vunpack.c.l.b16 %v80
    %v132 = vunpack.c.h.b16 %v80
    %v133 = vunpack.c.l.b16 %v81
    %v134 = vunpack.c.h.b16 %v81
    %v135 = vunpack.c.l.b16 %v82
    %v136 = vunpack.c.h.b16 %v82
    %v137 = vpack.c.b16 %v107, %v105
    %v138 = vpack.c.b16 %v108, %v106
    %v139 = vpack.c.b16 %v111, %v109
    %v140 = vpack.c.b16 %v112, %v110
    %v141 = vpack.c.b16 %v115, %v113
    %v142 = vpack.c.b16 %v116, %v114
    %v143 = vpack.c.b16 %v119, %v117
    %v144 = vpack.c.b16 %v120, %v118
    %v145 = vpack.c.b16 %v123, %v121
    %v146 = vpack.c.b16 %v124, %v122
    %v147 = vpack.c.b16 %v127, %v125
    %v148 = vpack.c.b16 %v128, %v126
    %v149 = vpack.c.b16 %v131, %v129
    %v150 = vpack.c.b16 %v132, %v130
    %v151 = vpack.c.b16 %v135, %v133
    %v152 = vpack.c.b16 %v136, %v134
    %169 = vmatpush.bf16.msra.mxu0 %v151
    %170 = vmatpush.bf16.msra.mxu0 %v149
    %171 = vmatpush.bf16.msra.mxu0 %v147
    %172 = vmatpush.bf16.msra.mxu0 %v145
    %173 = vmatpush.bf16.msra.mxu0 %v143
    %174 = vmatpush.bf16.msra.mxu0 %v141
    %175 = vmatpush.bf16.msra.mxu0 %v139
    %176 = vmatpush.bf16.msra.mxu0 %v137
    %177 = vmatmul.bf16.gmra.mxu0 %v66
    %v178 = vpop.f32.mrf.mxu0
    %v179 = vadd.f32 %v85, %v178
    %v180 = vpop.f32.mrf.mxu0
    %181 = vdwg.mxu0
    %182 = vmatpush.bf16.msra.mxu0 %v152
    %183 = vmatpush.bf16.msra.mxu0 %v150
    %184 = vmatpush.bf16.msra.mxu0 %v148
    %185 = vmatpush.bf16.msra.mxu0 %v146
    %186 = vmatpush.bf16.msra.mxu0 %v144
    %187 = vmatpush.bf16.msra.mxu0 %v142
    %188 = vmatpush.bf16.msra.mxu0 %v140
    %189 = vmatpush.bf16.msra.mxu0 %v138
    %190 = vmatmul.bf16.gmra.mxu0 %v66
    %v191 = vpop.f32.mrf.mxu0
    %v192 = vadd.f32 %v86, %v191
    %v193 = vpop.f32.mrf.mxu0
    %194 = vdwg.mxu0
    %v195 = vmax.f32 %v179, 0.0
    %v196 = vmax.f32 %v192, 0.0
    %v197 = vpack.c.bf16 %v195, %v195
    %v198 = vpack.c.bf16 %v196, %v196
    %v199 = vld [vmem:[#allocation4] sm:$0xf]
    %v200 = vld [vmem:[#allocation4 + $0x4] sm:$0xf]
    %v201 = vld [vmem:[#allocation4 + $0x8] sm:$0xf]
    %v202 = vld [vmem:[#allocation4 + $0xc] sm:$0xf]
    %v203 = vld [vmem:[#allocation4 + $0x10] sm:$0xf]
    %v204 = vld [vmem:[#allocation4 + $0x14] sm:$0xf]
    %v205 = vld [vmem:[#allocation4 + $0x18] sm:$0xf]
    %v206 = vld [vmem:[#allocation4 + $0x1c] sm:$0xf]
    %v207 = vld [vmem:[#allocation4 + $0x20] sm:$0xf]
    %v208 = vld [vmem:[#allocation4 + $0x24] sm:$0xf]
    %v209 = vld [vmem:[#allocation4 + $0x28] sm:$0xf]
    %v210 = vld [vmem:[#allocation4 + $0x2c] sm:$0xf]
    %v211 = vld [vmem:[#allocation4 + $0x30] sm:$0xf]
    %v212 = vld [vmem:[#allocation4 + $0x34] sm:$0xf]
    %v213 = vld [vmem:[#allocation4 + $0x38] sm:$0xf]
    %v214 = vld [vmem:[#allocation4 + $0x3c] sm:$0xf]
    %v215 = vld [vmem:[#allocation4 + $0x40] sm:$0xf]
    %v216 = vld [vmem:[#allocation4 + $0x44] sm:$0xf]
    %v217 = vld [vmem:[#allocation4 + $0x48] sm:$0xf]
    %v218 = vld [vmem:[#allocation4 + $0x4c] sm:$0xf]
    %v219 = vld [vmem:[#allocation4 + $0x50] sm:$0xf]
    %v220 = vld [vmem:[#allocation4 + $0x54] sm:$0xf]
    %v221 = vld [vmem:[#allocation4 + $0x58] sm:$0xf]
    %v222 = vld [vmem:[#allocation4 + $0x5c] sm:$0xf]
    %v223 = vld [vmem:[#allocation4 + $0x60] sm:$0xf]
    %v224 = vld [vmem:[#allocation4 + $0x64] sm:$0xf]
    %v225 = vld [vmem:[#allocation4 + $0x68] sm:$0xf]
    %v226 = vld [vmem:[#allocation4 + $0x6c] sm:$0xf]
    %v227 = vld [vmem:[#allocation4 + $0x70] sm:$0xf]
    %v228 = vld [vmem:[#allocation4 + $0x74] sm:$0xf]
    %v229 = vld [vmem:[#allocation4 + $0x78] sm:$0xf]
    %v230 = vld [vmem:[#allocation4 + $0x7c] sm:$0xf]
    %v231 = vld [vmem:[%s6] sm:$0x1]
    %v233 = vperm.slane %v231, 0
    %v267 = vunpack.c.l.b16 %v199
    %v268 = vunpack.c.l.b16 %v200
    %v269 = vunpack.c.l.b16 %v201
    %v270 = vunpack.c.l.b16 %v202
    %v271 = vunpack.c.l.b16 %v203
    %v272 = vunpack.c.l.b16 %v204
    %v273 = vunpack.c.l.b16 %v205
    %v274 = vunpack.c.l.b16 %v206
    %v275 = vunpack.c.l.b16 %v207
    %v276 = vunpack.c.l.b16 %v208
    %v277 = vunpack.c.l.b16 %v209
    %v278 = vunpack.c.l.b16 %v210
    %v279 = vunpack.c.l.b16 %v211
    %v280 = vunpack.c.l.b16 %v212
    %v281 = vunpack.c.l.b16 %v213
    %v282 = vunpack.c.l.b16 %v214
    %v283 = vunpack.c.l.b16 %v215
    %v284 = vunpack.c.l.b16 %v216
    %v285 = vunpack.c.l.b16 %v217
    %v286 = vunpack.c.l.b16 %v218
    %v287 = vunpack.c.l.b16 %v219
    %v288 = vunpack.c.l.b16 %v220
    %v289 = vunpack.c.l.b16 %v221
    %v290 = vunpack.c.l.b16 %v222
    %v291 = vunpack.c.l.b16 %v223
    %v292 = vunpack.c.l.b16 %v224
    %v293 = vunpack.c.l.b16 %v225
    %v294 = vunpack.c.l.b16 %v226
    %v295 = vunpack.c.l.b16 %v227
    %v296 = vunpack.c.l.b16 %v228
    %v297 = vunpack.c.l.b16 %v229
    %v298 = vunpack.c.l.b16 %v230
    %v299 = vpack.c.b16 %v268, %v267
    %v300 = vpack.c.b16 %v270, %v269
    %v301 = vpack.c.b16 %v272, %v271
    %v302 = vpack.c.b16 %v274, %v273
    %v303 = vpack.c.b16 %v276, %v275
    %v304 = vpack.c.b16 %v278, %v277
    %v305 = vpack.c.b16 %v280, %v279
    %v306 = vpack.c.b16 %v282, %v281
    %v307 = vpack.c.b16 %v284, %v283
    %v308 = vpack.c.b16 %v286, %v285
    %v309 = vpack.c.b16 %v288, %v287
    %v310 = vpack.c.b16 %v290, %v289
    %v311 = vpack.c.b16 %v292, %v291
    %v312 = vpack.c.b16 %v294, %v293
    %v313 = vpack.c.b16 %v296, %v295
    %v314 = vpack.c.b16 %v298, %v297
    %331 = vmatpush.bf16.msra.mxu0 %v306
    %332 = vmatpush.bf16.msra.mxu0 %v305
    %333 = vmatpush.bf16.msra.mxu0 %v304
    %334 = vmatpush.bf16.msra.mxu0 %v303
    %335 = vmatpush.bf16.msra.mxu0 %v302
    %336 = vmatpush.bf16.msra.mxu0 %v301
    %337 = vmatpush.bf16.msra.mxu0 %v300
    %338 = vmatpush.bf16.msra.mxu0 %v299
    %339 = vmatmul.bf16.gmra.mxu0 %v197
    %v340 = vpop.f32.mrf.mxu0
    %v341 = vadd.f32 %v233, %v340
    %v342 = vpop.f32.mrf.mxu0
    %343 = vdwg.mxu0
    %344 = vmatpush.bf16.msra.mxu0 %v314
    %345 = vmatpush.bf16.msra.mxu0 %v313
    %346 = vmatpush.bf16.msra.mxu0 %v312
    %347 = vmatpush.bf16.msra.mxu0 %v311
    %348 = vmatpush.bf16.msra.mxu0 %v310
    %349 = vmatpush.bf16.msra.mxu0 %v309
    %350 = vmatpush.bf16.msra.mxu0 %v308
    %351 = vmatpush.bf16.msra.mxu0 %v307
    %352 = vmatmul.bf16.gmra.mxu0 %v198
    %v353 = vpop.f32.mrf.mxu0
    %v354 = vadd.f32 %v341, %v353
    %v355 = vpop.f32.mrf.mxu0
    %356 = vdwg.mxu0
    %v357 = vtanh.pop %v354
    %v358 = vpack.c.bf16 %v357, %v357
    %v359 = vld [vmem:[%s7] sm:$0xf]
    %v360 = vld [vmem:[%s7 + $0x4] sm:$0xf]
    %v361 = vld [vmem:[%s7 + $0x8] sm:$0xf]
    %v362 = vld [vmem:[%s7 + $0xc] sm:$0xf]
    %v363 = vld [vmem:[%s7 + $0x10] sm:$0xf]
    %v364 = vld [vmem:[%s7 + $0x14] sm:$0xf]
    %v365 = vld [vmem:[%s7 + $0x18] sm:$0xf]
    %v366 = vld [vmem:[%s7 + $0x1c] sm:$0xf]
    %v367 = vld [vmem:[%s7 + $0x20] sm:$0xf]
    %v368 = vld [vmem:[%s7 + $0x24] sm:$0xf]
    %v369 = vld [vmem:[%s7 + $0x28] sm:$0xf]
    %v370 = vld [vmem:[%s7 + $0x2c] sm:$0xf]
    %v371 = vld [vmem:[%s7 + $0x30] sm:$0xf]
    %v372 = vld [vmem:[%s7 + $0x34] sm:$0xf]
    %v373 = vld [vmem:[%s7 + $0x38] sm:$0xf]
    %v374 = vld [vmem:[%s7 + $0x3c] sm:$0xf]
    %v375 = vld [vmem:[%s8] sm:$0x1]
    %v377 = vperm.slane %v375, 0
    %v395 = vunpack.c.l.b16 %v359
    %v396 = vunpack.c.l.b16 %v360
    %v397 = vunpack.c.l.b16 %v361
    %v398 = vunpack.c.l.b16 %v362
    %v399 = vunpack.c.l.b16 %v363
    %v400 = vunpack.c.l.b16 %v364
    %v401 = vunpack.c.l.b16 %v365
    %v402 = vunpack.c.l.b16 %v366
    %v403 = vunpack.c.l.b16 %v367
    %v404 = vunpack.c.l.b16 %v368
    %v405 = vunpack.c.l.b16 %v369
    %v406 = vunpack.c.l.b16 %v370
    %v407 = vunpack.c.l.b16 %v371
    %v408 = vunpack.c.l.b16 %v372
    %v409 = vunpack.c.l.b16 %v373
    %v410 = vunpack.c.l.b16 %v374
    %v411 = vpack.c.b16 %v396, %v395
    %v412 = vpack.c.b16 %v398, %v397
    %v413 = vpack.c.b16 %v400, %v399
    %v414 = vpack.c.b16 %v402, %v401
    %v415 = vpack.c.b16 %v404, %v403
    %v416 = vpack.c.b16 %v406, %v405
    %v417 = vpack.c.b16 %v408, %v407
    %v418 = vpack.c.b16 %v410, %v409
    %427 = vmatpush.bf16.msra.mxu0 %v418
    %428 = vmatpush.bf16.msra.mxu0 %v417
    %429 = vmatpush.bf16.msra.mxu0 %v416
    %430 = vmatpush.bf16.msra.mxu0 %v415
    %431 = vmatpush.bf16.msra.mxu0 %v414
    %432 = vmatpush.bf16.msra.mxu0 %v413
    %433 = vmatpush.bf16.msra.mxu0 %v412
    %434 = vmatpush.bf16.msra.mxu0 %v411
    %435 = vmatmul.bf16.gmra.mxu0 %v358
    %v436 = vpop.f32.mrf.mxu0
    %v437 = vadd.f32 %v377, %v436
    %v438 = vpop.f32.mrf.mxu0
    %439 = vdwg.mxu0
    %v440 = vld [vmem:[%s1] sm:$0xff]
    %v441 = vadd.f32 %v437, %v440
    %442 = vmax.xlane.f32.xlu0 %v441
    %v443 = vpop.xlane.xlu0 %442
    %v444 = vsub.f32 %v441, %v443
    %v445 = vmul.f32 %v444, 1.442695
    %v446 = vpow.pop %v445
    %447 = vadd.xlane.f32.xlu0 %v446
    %v448 = vpop.xlane.xlu0 %447
    %v449 = vlog2.pop %v448
    %v450 = vmul.f32 %v449, 0.6931472
    %v451 = vadd.f32 %v443, %v450
    %v452 = vsub.f32 %v441, %v451
    %v453 = vld [vmem:[%s2] sm:$0xff]
    %v454 = vadd.f32 %v441, %v453
    %455 = vmax.xlane.f32.xlu0 %v454
    %v456 = vpop.xlane.xlu0 %455
    %v457 = vlaneseq
    %v458 = vand.u32 %v457, 127
    %vm459 = vcmp.ge.f32.partialorder %v454, %v456
    %v460 = vsel %vm459, %v458, 128
    %v461 = vand.u32 %v460, 65535
    %v462 = vshra.s32 %v460, 16
    %v463 = vcvt.s32.f32 %v461
    %v464 = vcvt.s32.f32 %v462
    %465 = vmin.xlane.f32.xlu0 %v464
    %v466 = vpop.xlane.xlu0 %465
    %vm467 = vcmp.eq.f32.partialorder %v464, %v466
    %v468 = vsel %vm467, %v463, inf
    %469 = vmin.xlane.f32.xlu0 %v468
    %v470 = vpop.xlane.xlu0 %469
    %v471 = vcvt.f32.s32 %v470
    %v472 = vcvt.f32.s32 %v466
    %v473 = vshll.u32 %v472, 16
    %v474 = vadd.s32 %v473, %v471
    %vm475 = vcmask 7168
    %476 = vst.msk [vmem:[%s9] sm:$0xff] %vm475, %v474
    %vm477 = vcmp.eq.s32.totalorder %v458, %v474
    %v478 = vsel %vm477, %v452, 0.0
    %479 = vadd.xlane.f32.xlu0 %v478
    %v480 = vpop.xlane.xlu0 %479
    %481 = vst.msk [vmem:[%s10] sm:$0xff] %vm475, %v480
    // Predicated region
    $region46: #{_forward_single.1} parent=1 // pred_check
      _
    $region47: #{_forward_single.1} parent=1 // pred_check_branch
      %483 = sbr.rel (0) target = $region49
    $region48: #{_forward_single.1} parent=1 // pred_region
      _
    $region49: #{_forward_single.1} parent=1 // pred_fallthru
      _
    // Predicated region
    $region50: #{_forward_single.1} parent=1 // pred_check
      _
    $region51: #{_forward_single.1} parent=1 // pred_check_branch
      %485 = sbr.rel (0) target = $region53
    $region52: #{_forward_single.1} parent=1 // pred_region
      _
    $region53: #{_forward_single.1} parent=1 // pred_fallthru
      _
    // Predicated region
    $region54: #{_forward_single.1} parent=1 // pred_check
      _
    $region55: #{_forward_single.1} parent=1 // pred_check_branch
      %487 = sbr.rel (0) target = $region57
    $region56: #{_forward_single.1} parent=1 // pred_region
      _
    $region57: #{_forward_single.1} parent=1 // pred_fallthru
      _
    // Predicated region
    $region58: #{_forward_single.1} parent=1 // pred_check
      _
    $region59: #{_forward_single.1} parent=1 // pred_check_branch
      %489 = sbr.rel (0) target = $region61
    $region60: #{_forward_single.1} parent=1 // pred_region
      _
    $region61: #{_forward_single.1} parent=1 // pred_fallthru
      _
    %490 = vsyncpa [#allocation3], 1
    %491 = vsyncpa [#allocation5], 1

</llo_original>
